<compile_context>
chip_gen: v7x
topology: tpu7x:2x2x1
jax: 0.10.0
libtpu: 0.0.40
codegen_flags: <defaults>
</compile_context>

<pallas_src>
import math

import jax
import jax.numpy as jnp
from jax.experimental import pallas as pl
from jax.experimental.pallas import tpu as pltpu  # noqa: F401  (TPU backend)


# ----------------------------------------------------------------------------
# torch.tensor_split semantics helpers (pure python, static shapes)
# ----------------------------------------------------------------------------
def _bounds_from_sections(length, n):
    """torch.tensor_split(t, n, dim): first length%n chunks get ceil, rest floor."""
    q, r = divmod(length, n)
    sizes = [q + 1] * r + [q] * (n - r)
    bounds, start = [], 0
    for s in sizes:
        bounds.append((start, start + s))
        start += s
    return bounds


def _bounds_from_indices(length, indices):
    """torch.tensor_split(t, (i0, i1, ...), dim)."""
    pts = [0] + [min(i, length) for i in indices] + [length]
    return list(zip(pts[:-1], pts[1:]))


def _specs_for_dim(shape, dim, bounds, scale=1):
    """For each (start, stop) along `dim`, a full static slice spec (scaled)."""
    specs = []
    for (start, stop) in bounds:
        spec = [(0, s) for s in shape]
        spec[dim] = (start * scale, stop * scale)
        specs.append(tuple(spec))
    return specs


# ----------------------------------------------------------------------------
# Single merged Pallas kernel: copy static slices of several inputs into
# separate outputs.  `plan` maps each output to (input index, slice spec).
# Zero-sized outputs are produced outside the kernel (Mosaic can't lower them).
# ----------------------------------------------------------------------------
def pallas_merged_split(inputs, plan, unique_input_bytes):
    n_in = len(inputs)

    results = [None] * len(plan)
    kernel_entries = []  # (result position, input index, spec, out shape)
    for pos, (i, spec) in enumerate(plan):
        shape = tuple(stop - start for (start, stop) in spec)
        if math.prod(shape) == 0:
            # Guard: empty split -> trivially equal to zeros of that shape.
            results[pos] = jnp.zeros(shape, inputs[i].dtype)
        else:
            kernel_entries.append((pos, i, spec, shape))

    out_shapes = tuple(
        jax.ShapeDtypeStruct(shape, inputs[i].dtype)
        for (_, i, _, shape) in kernel_entries
    )

    def kernel(*refs):
        in_refs = refs[:n_in]
        out_refs = refs[n_in:]
        for o_ref, (_, i, spec, _) in zip(out_refs, kernel_entries):
            idx = tuple(slice(start, stop) for (start, stop) in spec)
            # Direct static ref slice -> direct vld/vst per output.
            o_ref[...] = in_refs[i][idx]

    out_bytes = sum(
        math.prod(s.shape) * jnp.dtype(s.dtype).itemsize for s in out_shapes
    )
    cost = pl.CostEstimate(
        flops=0, transcendentals=0, bytes_accessed=unique_input_bytes + out_bytes
    )

    # Grid-less call: block == full array for every input/output, all in VMEM
    # (total << VMEM on v5e/v6e/v7x).  No compiler_params on purpose: this is
    # overhead-bound, not resource-bound.
    outs = pl.pallas_call(kernel, out_shape=out_shapes, cost_estimate=cost)(*inputs)

    for (pos, _, _, _), o in zip(kernel_entries, outs):
        results[pos] = o
    return results


# ----------------------------------------------------------------------------
# Model.forward equivalent
# ----------------------------------------------------------------------------
def model_forward(x, y, z, w):
    # NOTE: the flattened views below assume row-major (default) layout of the
    # freshly-created inputs; a non-default upstream layout would need a copy.
    N = x.shape[0]
    ZA, ZB, ZC = z.shape
    A, B, C, D = w.shape

    x2d = x.reshape(1, N)            # 1-D -> 2-D for TPU VMEM blocks
    z2 = z.reshape(ZA, ZB * ZC)      # z dim-0 / dim-1 families (1 tile each)
    z_cd = z.reshape(ZA * ZB, ZC)    # z dim-2 family
    w2d = w.reshape(A, B * C * D)    # w dim-0 (rows) + dim-1 (lane-aligned cols)
    w_cd = w.reshape(A * B, C * D)   # w dim-2 family (sublane dense)

    inputs = (x2d, y, z2, z_cd, w2d, w_cd)

    plan = []
    # x : tensor_split(x, (12, 13)) along dim 0  (taken on x2d dim 1)
    plan += [(0, s) for s in _specs_for_dim(x2d.shape, 1, _bounds_from_indices(N, (12, 13)))]
    # y : 2 sections dim0 ; 3 sections dim1
    plan += [(1, s) for s in _specs_for_dim(y.shape, 0, _bounds_from_sections(y.shape[0], 2))]
    plan += [(1, s) for s in _specs_for_dim(y.shape, 1, _bounds_from_sections(y.shape[1], 3))]
    # z : (3,) dim0 and (1,) dim1 on z2 ; 3 sections dim2 on z_cd
    plan += [(2, s) for s in _specs_for_dim(z2.shape, 0, _bounds_from_indices(ZA, (3,)))]
    plan += [(2, s) for s in _specs_for_dim(z2.shape, 1, _bounds_from_indices(ZB, (1,)), scale=ZC)]
    plan += [(3, s) for s in _specs_for_dim(z_cd.shape, 1, _bounds_from_sections(ZC, 3))]
    # w : (2,4) dim0 on w2d rows ; 2 sections dim1 on w2d cols ; (1,5) dim2 on w_cd cols
    plan += [(4, s) for s in _specs_for_dim(w2d.shape, 0, _bounds_from_indices(A, (2, 4)))]
    plan += [(4, s) for s in _specs_for_dim(w2d.shape, 1, _bounds_from_sections(B, 2), scale=C * D)]
    plan += [(5, s) for s in _specs_for_dim(w_cd.shape, 1, _bounds_from_indices(C, (1, 5)), scale=D)]

    in_bytes = sum(a.size * a.dtype.itemsize for a in (x, y, z, w))  # unique arrays once
    outs = pallas_merged_split(inputs, plan, in_bytes)

    # Unpack + reshape back to the PyTorch-equivalent shapes (glue only).
    x0, x1, x2 = (o.reshape(-1) for o in outs[0:3])
    y0, y1, y2, y3, y4 = outs[3:8]
    z0, z1 = (o.reshape(o.shape[0], ZB, ZC) for o in outs[8:10])
    z2_, z3 = (o.reshape(ZA, o.shape[1] // ZC, ZC) for o in outs[10:12])
    z4, z5, z6 = (o.reshape(ZA, ZB, o.shape[1]) for o in outs[12:15])
    w0, w1, w2 = (o.reshape(o.shape[0], B, C, D) for o in outs[15:18])
    w3, w4 = (o.reshape(A, o.shape[1] // (C * D), C, D) for o in outs[18:20])
    w5, w6, w7 = (o.reshape(A, B, o.shape[1] // D, D) for o in outs[20:23])

    # w dim-3 family: each output is (6,8,8,d) with d <= 10 -> 48 masked (8,128)
    # tiles per output in-kernel regardless of flattening, so per the perf
    # review these are emitted as plain XLA slices (same semantics, no forced
    # masked-vst / extra DMA work inside the kernel).
    w8, w9, wa, wb, wc = (
        w[..., :1], w[..., 1:3], w[..., 3:7], w[..., 7:17], w[..., 17:]
    )

    return (x0, x1, x2, y0, y1, y2, y3, y4, z0, z1, z2_, z3, z4, z5, z6,
            w0, w1, w2, w3, w4, w5, w6, w7, w8, w9, wa, wb, wc)


# ----------------------------------------------------------------------------
# Pure-JAX reference (for correctness check)
# ----------------------------------------------------------------------------
def model_forward_ref(x, y, z, w):
    outs = []
    outs += [x[:12], x[12:13], x[13:]]
    outs += [y[:3], y[3:], y[:, :4], y[:, 4:8], y[:, 8:]]
    outs += [z[:3], z[3:], z[:, :1], z[:, 1:], z[:, :, :3], z[:, :, 3:6], z[:, :, 6:]]
    outs += [w[:2], w[2:4], w[4:], w[:, :4], w[:, 4:],
             w[:, :, :1], w[:, :, 1:5], w[:, :, 5:],
             w[:, :, :, :1], w[:, :, :, 1:3], w[:, :, :, 3:7],
             w[:, :, :, 7:17], w[:, :, :, 17:]]
    return tuple(outs)


if __name__ == "__main__":
    key = jax.random.PRNGKey(0)
    kx, ky, kz, kw = jax.random.split(key, 4)
    # Small shapes consistent with the split indices used in forward():
    x = jax.random.normal(kx, (16,), dtype=jnp.float32)          # dim0 >= 13
    y = jax.random.normal(ky, (6, 12), dtype=jnp.float32)        # 2-way / 3-way splits
    z = jax.random.normal(kz, (6, 8, 9), dtype=jnp.float32)      # (3,), (1,), 3 sections
    w = jax.random.normal(kw, (6, 8, 8, 24), dtype=jnp.float32)  # dim3 >= 17

    outs = model_forward(x, y, z, w)
    outs = jax.block_until_ready(outs)

    refs = model_forward_ref(x, y, z, w)
    assert len(outs) == 28
    for o, r in zip(outs, refs):
        assert o.shape == r.shape, (o.shape, r.shape)
        assert o.dtype == r.dtype
        assert bool(jnp.all(o == r))

    print("KERNEL_OK")
</pallas_src>

<mosaic_0001>
module attributes {stable_mosaic.version = 11 : i64} {
  func.func @kernel(%arg0: memref<1x16xf32, #tpu.memory_space<vmem>>, %arg1: memref<6x12xf32, #tpu.memory_space<vmem>>, %arg2: memref<6x72xf32, #tpu.memory_space<vmem>>, %arg3: memref<48x9xf32, #tpu.memory_space<vmem>>, %arg4: memref<6x1536xf32, #tpu.memory_space<vmem>>, %arg5: memref<48x192xf32, #tpu.memory_space<vmem>>, %arg6: memref<1x12xf32, #tpu.memory_space<vmem>>, %arg7: memref<1x1xf32, #tpu.memory_space<vmem>>, %arg8: memref<1x3xf32, #tpu.memory_space<vmem>>, %arg9: memref<3x12xf32, #tpu.memory_space<vmem>>, %arg10: memref<3x12xf32, #tpu.memory_space<vmem>>, %arg11: memref<6x4xf32, #tpu.memory_space<vmem>>, %arg12: memref<6x4xf32, #tpu.memory_space<vmem>>, %arg13: memref<6x4xf32, #tpu.memory_space<vmem>>, %arg14: memref<3x72xf32, #tpu.memory_space<vmem>>, %arg15: memref<3x72xf32, #tpu.memory_space<vmem>>, %arg16: memref<6x9xf32, #tpu.memory_space<vmem>>, %arg17: memref<6x63xf32, #tpu.memory_space<vmem>>, %arg18: memref<48x3xf32, #tpu.memory_space<vmem>>, %arg19: memref<48x3xf32, #tpu.memory_space<vmem>>, %arg20: memref<48x3xf32, #tpu.memory_space<vmem>>, %arg21: memref<2x1536xf32, #tpu.memory_space<vmem>>, %arg22: memref<2x1536xf32, #tpu.memory_space<vmem>>, %arg23: memref<2x1536xf32, #tpu.memory_space<vmem>>, %arg24: memref<6x768xf32, #tpu.memory_space<vmem>>, %arg25: memref<6x768xf32, #tpu.memory_space<vmem>>, %arg26: memref<48x24xf32, #tpu.memory_space<vmem>>, %arg27: memref<48x96xf32, #tpu.memory_space<vmem>>, %arg28: memref<48x72xf32, #tpu.memory_space<vmem>>) attributes {dimension_semantics = [], scalar_prefetch = 0 : i64, scratch_operands = 0 : i64, tpu.core_type = #tpu.core_type<tc>} {
    %c0 = arith.constant 0 : index
    %c0_0 = arith.constant 0 : index
    %0 = vector.load %arg0[%c0, %c0_0] : memref<1x16xf32, #tpu.memory_space<vmem>>, vector<1x12xf32>
    %c0_1 = arith.constant 0 : index
    %c0_2 = arith.constant 0 : index
    %1 = vector.load %arg6[%c0_1, %c0_2] : memref<1x12xf32, #tpu.memory_space<vmem>>, vector<1x12xf32>
    tpu.vector_store %arg6[%c0_1, %c0_2], %0 {strides = array<i32>} : memref<1x12xf32, #tpu.memory_space<vmem>>, vector<1x12xf32>,
    %c0_3 = arith.constant 0 : index
    %c12 = arith.constant 12 : index
    %2 = vector.load %arg0[%c0_3, %c12] : memref<1x16xf32, #tpu.memory_space<vmem>>, vector<1x1xf32>
    %c0_4 = arith.constant 0 : index
    %c0_5 = arith.constant 0 : index
    %3 = vector.load %arg7[%c0_4, %c0_5] : memref<1x1xf32, #tpu.memory_space<vmem>>, vector<1x1xf32>
    tpu.vector_store %arg7[%c0_4, %c0_5], %2 {strides = array<i32>} : memref<1x1xf32, #tpu.memory_space<vmem>>, vector<1x1xf32>,
    %c0_6 = arith.constant 0 : index
    %c13 = arith.constant 13 : index
    %4 = vector.load %arg0[%c0_6, %c13] : memref<1x16xf32, #tpu.memory_space<vmem>>, vector<1x3xf32>
    %c0_7 = arith.constant 0 : index
    %c0_8 = arith.constant 0 : index
    %5 = vector.load %arg8[%c0_7, %c0_8] : memref<1x3xf32, #tpu.memory_space<vmem>>, vector<1x3xf32>
    tpu.vector_store %arg8[%c0_7, %c0_8], %4 {strides = array<i32>} : memref<1x3xf32, #tpu.memory_space<vmem>>, vector<1x3xf32>,
    %c0_9 = arith.constant 0 : index
    %c0_10 = arith.constant 0 : index
    %6 = vector.load %arg1[%c0_9, %c0_10] : memref<6x12xf32, #tpu.memory_space<vmem>>, vector<3x12xf32>
    %c0_11 = arith.constant 0 : index
    %c0_12 = arith.constant 0 : index
    %7 = vector.load %arg9[%c0_11, %c0_12] : memref<3x12xf32, #tpu.memory_space<vmem>>, vector<3x12xf32>
    tpu.vector_store %arg9[%c0_11, %c0_12], %6 {strides = array<i32>} : memref<3x12xf32, #tpu.memory_space<vmem>>, vector<3x12xf32>,
    %c3 = arith.constant 3 : index
    %c0_13 = arith.constant 0 : index
    %8 = vector.load %arg1[%c3, %c0_13] : memref<6x12xf32, #tpu.memory_space<vmem>>, vector<3x12xf32>
    %c0_14 = arith.constant 0 : index
    %c0_15 = arith.constant 0 : index
    %9 = vector.load %arg10[%c0_14, %c0_15] : memref<3x12xf32, #tpu.memory_space<vmem>>, vector<3x12xf32>
    tpu.vector_store %arg10[%c0_14, %c0_15], %8 {strides = array<i32>} : memref<3x12xf32, #tpu.memory_space<vmem>>, vector<3x12xf32>,
    %c0_16 = arith.constant 0 : index
    %c0_17 = arith.constant 0 : index
    %10 = vector.load %arg1[%c0_16, %c0_17] : memref<6x12xf32, #tpu.memory_space<vmem>>, vector<6x4xf32>
    %c0_18 = arith.constant 0 : index
    %c0_19 = arith.constant 0 : index
    %11 = vector.load %arg11[%c0_18, %c0_19] : memref<6x4xf32, #tpu.memory_space<vmem>>, vector<6x4xf32>
    tpu.vector_store %arg11[%c0_18, %c0_19], %10 {strides = array<i32>} : memref<6x4xf32, #tpu.memory_space<vmem>>, vector<6x4xf32>,
    %c0_20 = arith.constant 0 : index
    %c4 = arith.constant 4 : index
    %12 = vector.load %arg1[%c0_20, %c4] : memref<6x12xf32, #tpu.memory_space<vmem>>, vector<6x4xf32>
    %c0_21 = arith.constant 0 : index
    %c0_22 = arith.constant 0 : index
    %13 = vector.load %arg12[%c0_21, %c0_22] : memref<6x4xf32, #tpu.memory_space<vmem>>, vector<6x4xf32>
    tpu.vector_store %arg12[%c0_21, %c0_22], %12 {strides = array<i32>} : memref<6x4xf32, #tpu.memory_space<vmem>>, vector<6x4xf32>,
    %c0_23 = arith.constant 0 : index
    %c8 = arith.constant 8 : index
    %14 = vector.load %arg1[%c0_23, %c8] : memref<6x12xf32, #tpu.memory_space<vmem>>, vector<6x4xf32>
    %c0_24 = arith.constant 0 : index
    %c0_25 = arith.constant 0 : index
    %15 = vector.load %arg13[%c0_24, %c0_25] : memref<6x4xf32, #tpu.memory_space<vmem>>, vector<6x4xf32>
    tpu.vector_store %arg13[%c0_24, %c0_25], %14 {strides = array<i32>} : memref<6x4xf32, #tpu.memory_space<vmem>>, vector<6x4xf32>,
    %c0_26 = arith.constant 0 : index
    %c0_27 = arith.constant 0 : index
    %16 = vector.load %arg2[%c0_26, %c0_27] : memref<6x72xf32, #tpu.memory_space<vmem>>, vector<3x72xf32>
    %c0_28 = arith.constant 0 : index
    %c0_29 = arith.constant 0 : index
    %17 = vector.load %arg14[%c0_28, %c0_29] : memref<3x72xf32, #tpu.memory_space<vmem>>, vector<3x72xf32>
    tpu.vector_store %arg14[%c0_28, %c0_29], %16 {strides = array<i32>} : memref<3x72xf32, #tpu.memory_space<vmem>>, vector<3x72xf32>,
    %c3_30 = arith.constant 3 : index
    %c0_31 = arith.constant 0 : index
    %18 = vector.load %arg2[%c3_30, %c0_31] : memref<6x72xf32, #tpu.memory_space<vmem>>, vector<3x72xf32>
    %c0_32 = arith.constant 0 : index
    %c0_33 = arith.constant 0 : index
    %19 = vector.load %arg15[%c0_32, %c0_33] : memref<3x72xf32, #tpu.memory_space<vmem>>, vector<3x72xf32>
    tpu.vector_store %arg15[%c0_32, %c0_33], %18 {strides = array<i32>} : memref<3x72xf32, #tpu.memory_space<vmem>>, vector<3x72xf32>,
    %c0_34 = arith.constant 0 : index
    %c0_35 = arith.constant 0 : index
    %20 = vector.load %arg2[%c0_34, %c0_35] : memref<6x72xf32, #tpu.memory_space<vmem>>, vector<6x9xf32>
    %c0_36 = arith.constant 0 : index
    %c0_37 = arith.constant 0 : index
    %21 = vector.load %arg16[%c0_36, %c0_37] : memref<6x9xf32, #tpu.memory_space<vmem>>, vector<6x9xf32>
    tpu.vector_store %arg16[%c0_36, %c0_37], %20 {strides = array<i32>} : memref<6x9xf32, #tpu.memory_space<vmem>>, vector<6x9xf32>,
    %c0_38 = arith.constant 0 : index
    %c9 = arith.constant 9 : index
    %22 = vector.load %arg2[%c0_38, %c9] : memref<6x72xf32, #tpu.memory_space<vmem>>, vector<6x63xf32>
    %c0_39 = arith.constant 0 : index
    %c0_40 = arith.constant 0 : index
    %23 = vector.load %arg17[%c0_39, %c0_40] : memref<6x63xf32, #tpu.memory_space<vmem>>, vector<6x63xf32>
    tpu.vector_store %arg17[%c0_39, %c0_40], %22 {strides = array<i32>} : memref<6x63xf32, #tpu.memory_space<vmem>>, vector<6x63xf32>,
    %c0_41 = arith.constant 0 : index
    %c0_42 = arith.constant 0 : index
    %24 = vector.load %arg3[%c0_41, %c0_42] : memref<48x9xf32, #tpu.memory_space<vmem>>, vector<48x3xf32>
    %c0_43 = arith.constant 0 : index
    %c0_44 = arith.constant 0 : index
    %25 = vector.load %arg18[%c0_43, %c0_44] : memref<48x3xf32, #tpu.memory_space<vmem>>, vector<48x3xf32>
    tpu.vector_store %arg18[%c0_43, %c0_44], %24 {strides = array<i32>} : memref<48x3xf32, #tpu.memory_space<vmem>>, vector<48x3xf32>,
    %c0_45 = arith.constant 0 : index
    %c3_46 = arith.constant 3 : index
    %26 = vector.load %arg3[%c0_45, %c3_46] : memref<48x9xf32, #tpu.memory_space<vmem>>, vector<48x3xf32>
    %c0_47 = arith.constant 0 : index
    %c0_48 = arith.constant 0 : index
    %27 = vector.load %arg19[%c0_47, %c0_48] : memref<48x3xf32, #tpu.memory_space<vmem>>, vector<48x3xf32>
    tpu.vector_store %arg19[%c0_47, %c0_48], %26 {strides = array<i32>} : memref<48x3xf32, #tpu.memory_space<vmem>>, vector<48x3xf32>,
    %c0_49 = arith.constant 0 : index
    %c6 = arith.constant 6 : index
    %28 = vector.load %arg3[%c0_49, %c6] : memref<48x9xf32, #tpu.memory_space<vmem>>, vector<48x3xf32>
    %c0_50 = arith.constant 0 : index
    %c0_51 = arith.constant 0 : index
    %29 = vector.load %arg20[%c0_50, %c0_51] : memref<48x3xf32, #tpu.memory_space<vmem>>, vector<48x3xf32>
    tpu.vector_store %arg20[%c0_50, %c0_51], %28 {strides = array<i32>} : memref<48x3xf32, #tpu.memory_space<vmem>>, vector<48x3xf32>,
    %c0_52 = arith.constant 0 : index
    %c0_53 = arith.constant 0 : index
    %30 = vector.load %arg4[%c0_52, %c0_53] : memref<6x1536xf32, #tpu.memory_space<vmem>>, vector<2x1536xf32>
    %c0_54 = arith.constant 0 : index
    %c0_55 = arith.constant 0 : index
    %31 = vector.load %arg21[%c0_54, %c0_55] : memref<2x1536xf32, #tpu.memory_space<vmem>>, vector<2x1536xf32>
    tpu.vector_store %arg21[%c0_54, %c0_55], %30 {strides = array<i32>} : memref<2x1536xf32, #tpu.memory_space<vmem>>, vector<2x1536xf32>,
    %c2 = arith.constant 2 : index
    %c0_56 = arith.constant 0 : index
    %32 = vector.load %arg4[%c2, %c0_56] : memref<6x1536xf32, #tpu.memory_space<vmem>>, vector<2x1536xf32>
    %c0_57 = arith.constant 0 : index
    %c0_58 = arith.constant 0 : index
    %33 = vector.load %arg22[%c0_57, %c0_58] : memref<2x1536xf32, #tpu.memory_space<vmem>>, vector<2x1536xf32>
    tpu.vector_store %arg22[%c0_57, %c0_58], %32 {strides = array<i32>} : memref<2x1536xf32, #tpu.memory_space<vmem>>, vector<2x1536xf32>,
    %c4_59 = arith.constant 4 : index
    %c0_60 = arith.constant 0 : index
    %34 = vector.load %arg4[%c4_59, %c0_60] : memref<6x1536xf32, #tpu.memory_space<vmem>>, vector<2x1536xf32>
    %c0_61 = arith.constant 0 : index
    %c0_62 = arith.constant 0 : index
    %35 = vector.load %arg23[%c0_61, %c0_62] : memref<2x1536xf32, #tpu.memory_space<vmem>>, vector<2x1536xf32>
    tpu.vector_store %arg23[%c0_61, %c0_62], %34 {strides = array<i32>} : memref<2x1536xf32, #tpu.memory_space<vmem>>, vector<2x1536xf32>,
    %c0_63 = arith.constant 0 : index
    %c0_64 = arith.constant 0 : index
    %36 = vector.load %arg4[%c0_63, %c0_64] : memref<6x1536xf32, #tpu.memory_space<vmem>>, vector<6x768xf32>
    %c0_65 = arith.constant 0 : index
    %c0_66 = arith.constant 0 : index
    %37 = vector.load %arg24[%c0_65, %c0_66] : memref<6x768xf32, #tpu.memory_space<vmem>>, vector<6x768xf32>
    tpu.vector_store %arg24[%c0_65, %c0_66], %36 {strides = array<i32>} : memref<6x768xf32, #tpu.memory_space<vmem>>, vector<6x768xf32>,
    %c0_67 = arith.constant 0 : index
    %c768 = arith.constant 768 : index
    %38 = vector.load %arg4[%c0_67, %c768] : memref<6x1536xf32, #tpu.memory_space<vmem>>, vector<6x768xf32>
    %c0_68 = arith.constant 0 : index
    %c0_69 = arith.constant 0 : index
    %39 = vector.load %arg25[%c0_68, %c0_69] : memref<6x768xf32, #tpu.memory_space<vmem>>, vector<6x768xf32>
    tpu.vector_store %arg25[%c0_68, %c0_69], %38 {strides = array<i32>} : memref<6x768xf32, #tpu.memory_space<vmem>>, vector<6x768xf32>,
    %c0_70 = arith.constant 0 : index
    %c0_71 = arith.constant 0 : index
    %40 = vector.load %arg5[%c0_70, %c0_71] : memref<48x192xf32, #tpu.memory_space<vmem>>, vector<48x24xf32>
    %c0_72 = arith.constant 0 : index
    %c0_73 = arith.constant 0 : index
    %41 = vector.load %arg26[%c0_72, %c0_73] : memref<48x24xf32, #tpu.memory_space<vmem>>, vector<48x24xf32>
    tpu.vector_store %arg26[%c0_72, %c0_73], %40 {strides = array<i32>} : memref<48x24xf32, #tpu.memory_space<vmem>>, vector<48x24xf32>,
    %c0_74 = arith.constant 0 : index
    %c24 = arith.constant 24 : index
    %42 = vector.load %arg5[%c0_74, %c24] : memref<48x192xf32, #tpu.memory_space<vmem>>, vector<48x96xf32>
    %c0_75 = arith.constant 0 : index
    %c0_76 = arith.constant 0 : index
    %43 = vector.load %arg27[%c0_75, %c0_76] : memref<48x96xf32, #tpu.memory_space<vmem>>, vector<48x96xf32>
    tpu.vector_store %arg27[%c0_75, %c0_76], %42 {strides = array<i32>} : memref<48x96xf32, #tpu.memory_space<vmem>>, vector<48x96xf32>,
    %c0_77 = arith.constant 0 : index
    %c120 = arith.constant 120 : index
    %44 = vector.load %arg5[%c0_77, %c120] : memref<48x192xf32, #tpu.memory_space<vmem>>, vector<48x72xf32>
    %c0_78 = arith.constant 0 : index
    %c0_79 = arith.constant 0 : index
    %45 = vector.load %arg28[%c0_78, %c0_79] : memref<48x72xf32, #tpu.memory_space<vmem>>, vector<48x72xf32>
    tpu.vector_store %arg28[%c0_78, %c0_79], %44 {strides = array<i32>} : memref<48x72xf32, #tpu.memory_space<vmem>>, vector<48x72xf32>,
    return
  }
}

</mosaic_0001>

<llo_original>
// kernel: tpu_custom_call.1
$region0: #{tpu_custom_call.1}
  #allocation0 [shape = 'u32[]', space=smem, size = 0x4, offset = 0x4, fixed_abs, tag = 'smem constant byte address 0x4 - core index']
  #allocation1 [shape = 'u32[144,128]{1,0:T(1,128)}', space=vmem, size = 0x12000, scoped, tag = 'internal scratch']
  %s0 = inlined_call_operand.vmem [shape: f32[1,16], index: 0, kind: input, shape index: {}]
  %s1 = inlined_call_operand.vmem [shape: f32[6,12], index: 1, kind: input, shape index: {}]
  %s2 = inlined_call_operand.vmem [shape: f32[6,72], index: 2, kind: input, shape index: {}]
  %s3 = inlined_call_operand.vmem [shape: f32[48,9], index: 3, kind: input, shape index: {}]
  %s4 = inlined_call_operand.hbm [shape: f32[6,1536], index: 4, kind: input, shape index: {}]
  %s5 = inlined_call_operand.hbm [shape: f32[48,192], index: 5, kind: input, shape index: {}]
  %s6 = inlined_call_operand.hbm [shape: f32[1,12], index: 6, kind: output, shape index: {0}]
  %s7 = inlined_call_operand.hbm [shape: f32[1,1], index: 7, kind: output, shape index: {1}]
  %s8 = inlined_call_operand.hbm [shape: f32[1,3], index: 8, kind: output, shape index: {2}]
  %s9 = inlined_call_operand.hbm [shape: f32[3,12], index: 9, kind: output, shape index: {3}]
  %s10 = inlined_call_operand.hbm [shape: f32[3,12], index: 10, kind: output, shape index: {4}]
  %s11 = inlined_call_operand.vmem [shape: f32[6,4], index: 11, kind: output, shape index: {5}]
  %s12 = inlined_call_operand.vmem [shape: f32[6,4], index: 12, kind: output, shape index: {6}]
  %s13 = inlined_call_operand.vmem [shape: f32[6,4], index: 13, kind: output, shape index: {7}]
  %s14 = inlined_call_operand.hbm [shape: f32[3,72], index: 14, kind: output, shape index: {8}]
  %s15 = inlined_call_operand.hbm [shape: f32[3,72], index: 15, kind: output, shape index: {9}]
  %s16 = inlined_call_operand.hbm [shape: f32[6,9], index: 16, kind: output, shape index: {10}]
  %s17 = inlined_call_operand.hbm [shape: f32[6,63], index: 17, kind: output, shape index: {11}]
  %s18 = inlined_call_operand.vmem [shape: f32[48,3], index: 18, kind: output, shape index: {12}]
  %s19 = inlined_call_operand.vmem [shape: f32[48,3], index: 19, kind: output, shape index: {13}]
  %s20 = inlined_call_operand.vmem [shape: f32[48,3], index: 20, kind: output, shape index: {14}]
  %s21 = inlined_call_operand.hbm [shape: f32[2,1536], index: 21, kind: output, shape index: {15}]
  %s22 = inlined_call_operand.hbm [shape: f32[2,1536], index: 22, kind: output, shape index: {16}]
  %s23 = inlined_call_operand.hbm [shape: f32[2,1536], index: 23, kind: output, shape index: {17}]
  %s24 = inlined_call_operand.hbm [shape: f32[6,768], index: 24, kind: output, shape index: {18}]
  %s25 = inlined_call_operand.hbm [shape: f32[6,768], index: 25, kind: output, shape index: {19}]
  %s26 = inlined_call_operand.vmem [shape: f32[48,24], index: 26, kind: output, shape index: {20}]
  %s27 = inlined_call_operand.hbm [shape: f32[48,96], index: 27, kind: output, shape index: {21}]
  %s28 = inlined_call_operand.hbm [shape: f32[48,72], index: 28, kind: output, shape index: {22}]
  %29 = xla_tuple %s6, %s7, %s8, %s9, %s10, %s11, %s12, %s13, %s14, %s15, %s16, %s17, %s18, %s19, %s20, %s21, %s22, %s23, %s24, %s25, %s26, %s27, %s28
  %s30 = sld [smem:[#allocation0]]
  $region218: #{tpu_custom_call.1} parent=0
    _
  %s32 = ssub.s32 1, %s30
  %s33 = scalar_select 0, %s32, %s30
  $region1: #{tpu_custom_call.1} parent=0
    #allocation2 [shape = 'u8[49152]{0}', space=vmem, size = 0xc000, scoped, tag = 'input window, operand 4, single buffered']
    #allocation3 [shape = 's32[1]{0}', space=sflag, size = 0x4, scoped, tag = 'scoped memory for tpu_custom_call.1']
    #allocation4 [shape = 's32[1]{0}', space=sflag, size = 0x4, scoped, tag = 'scoped memory for tpu_custom_call.1']
    #allocation5 [shape = 'u8[49152]{0}', space=vmem, size = 0xc000, scoped, tag = 'input window, operand 5, single buffered']
    #allocation6 [shape = 's32[1]{0}', space=sflag, size = 0x4, scoped, tag = 'scoped memory for tpu_custom_call.1']
    #allocation7 [shape = 'u8[512]{0}', space=vmem, size = 0x400, scoped, tag = 'output window, operand 0, single buffered']
    #allocation8 [shape = 'u8[512]{0}', space=vmem, size = 0x400, scoped, tag = 'output window, operand 1, single buffered']
    #allocation9 [shape = 's32[1]{0}', space=sflag, size = 0x4, scoped, tag = 'scoped memory for tpu_custom_call.1']
    #allocation10 [shape = 'u8[512]{0}', space=vmem, size = 0x400, scoped, tag = 'output window, operand 2, single buffered']
    #allocation11 [shape = 'u8[2048]{0}', space=vmem, size = 0x800, scoped, tag = 'output window, operand 3, single buffered']
    #allocation12 [shape = 's32[1]{0}', space=sflag, size = 0x4, scoped, tag = 'scoped memory for tpu_custom_call.1']
    #allocation13 [shape = 'u8[2048]{0}', space=vmem, size = 0x800, scoped, tag = 'output window, operand 4, single buffered']
    #allocation14 [shape = 'u8[2048]{0}', space=vmem, size = 0x800, scoped, tag = 'output window, operand 8, single buffered']
    #allocation15 [shape = 's32[1]{0}', space=sflag, size = 0x4, scoped, tag = 'scoped memory for tpu_custom_call.1']
    #allocation16 [shape = 'u8[2048]{0}', space=vmem, size = 0x800, scoped, tag = 'output window, operand 9, single buffered']
    #allocation17 [shape = 'u8[4096]{0}', space=vmem, size = 0x1000, scoped, tag = 'output window, operand 10, single buffered']
    #allocation18 [shape = 's32[1]{0}', space=sflag, size = 0x4, scoped, tag = 'scoped memory for tpu_custom_call.1']
    #allocation19 [shape = 'u8[4096]{0}', space=vmem, size = 0x1000, scoped, tag = 'output window, operand 11, single buffered']
    #allocation20 [shape = 'u8[12288]{0}', space=vmem, size = 0x3000, scoped, tag = 'output window, operand 15, single buffered']
    #allocation21 [shape = 's32[1]{0}', space=sflag, size = 0x4, scoped, tag = 'scoped memory for tpu_custom_call.1']
    #allocation22 [shape = 'u8[12288]{0}', space=vmem, size = 0x3000, scoped, tag = 'output window, operand 16, single buffered']
    #allocation23 [shape = 'u8[12288]{0}', space=vmem, size = 0x3000, scoped, tag = 'output window, operand 17, single buffered']
    #allocation24 [shape = 's32[1]{0}', space=sflag, size = 0x4, scoped, tag = 'scoped memory for tpu_custom_call.1']
    #allocation25 [shape = 'u8[24576]{0}', space=vmem, size = 0x6000, scoped, tag = 'output window, operand 18, single buffered']
    #allocation26 [shape = 'u8[24576]{0}', space=vmem, size = 0x6000, scoped, tag = 'output window, operand 19, single buffered']
    #allocation27 [shape = 's32[1]{0}', space=sflag, size = 0x4, scoped, tag = 'scoped memory for tpu_custom_call.1']
    #allocation28 [shape = 'u8[24576]{0}', space=vmem, size = 0x6000, scoped, tag = 'output window, operand 21, single buffered']
    #allocation29 [shape = 'u8[24576]{0}', space=vmem, size = 0x6000, scoped, tag = 'output window, operand 22, single buffered']
    #allocation30 [shape = 's32[1]{0}', space=sflag, size = 0x4, scoped, tag = 'scoped memory for tpu_custom_call.1']
    %34 = vsyncpa [#allocation3], 0
    %35 = vsyncpa [#allocation6], 0
    %36 = vsyncpa [#allocation4], 0
    %37 = vsyncpa [#allocation9], 0
    %38 = vsyncpa [#allocation12], 0
    %39 = vsyncpa [#allocation15], 0
    %40 = vsyncpa [#allocation18], 0
    %41 = vsyncpa [#allocation21], 0
    %42 = vsyncpa [#allocation24], 0
    %43 = vsyncpa [#allocation27], 0
    %44 = vsyncpa [#allocation30], 0
    // Predicated region
    $region2: #{tpu_custom_call.1} parent=1 // pred_check
      _
    $region3: #{tpu_custom_call.1} parent=1 // pred_check_branch
      %46 = sbr.rel (0) target = $region5
    $region4: #{tpu_custom_call.1} parent=1 // pred_region
      _
    $region5: #{tpu_custom_call.1} parent=1 // pred_fallthru
      _
    // Predicated region
    $region6: #{tpu_custom_call.1} parent=1 // pred_check
      _
    $region7: #{tpu_custom_call.1} parent=1 // pred_check_branch
      %48 = sbr.rel (0) target = $region9
    $region8: #{tpu_custom_call.1} parent=1 // pred_region
      _
    $region9: #{tpu_custom_call.1} parent=1 // pred_fallthru
      _
    // Predicated region
    $region10: #{tpu_custom_call.1} parent=1 // pred_check
      _
    $region11: #{tpu_custom_call.1} parent=1 // pred_check_branch
      %50 = sbr.rel (0) target = $region13
    $region12: #{tpu_custom_call.1} parent=1 // pred_region
      _
    $region13: #{tpu_custom_call.1} parent=1 // pred_fallthru
      _
    // Predicated region
    $region14: #{tpu_custom_call.1} parent=1 // pred_check
      _
    $region15: #{tpu_custom_call.1} parent=1 // pred_check_branch
      %52 = sbr.rel (0) target = $region17
    $region16: #{tpu_custom_call.1} parent=1 // pred_region
      _
    $region17: #{tpu_custom_call.1} parent=1 // pred_fallthru
      _
    // Predicated region
    $region18: #{tpu_custom_call.1} parent=1 // pred_check
      _
    $region19: #{tpu_custom_call.1} parent=1 // pred_check_branch
      %54 = sbr.rel (0) target = $region21
    $region20: #{tpu_custom_call.1} parent=1 // pred_region
      %s56 = ssub.s32 1536, 1536
      %57 = vsyncadd [#allocation3], %s56
      %s59 = sshll.u32 [#allocation2], 4
      %s60 = int_to_ptr.vmem [resolvable:$true] %s59
      %62 = dma.hbm_to_vmem [thread:$0]  %s4, 1536, %s60, [#allocation3]
    $region21: #{tpu_custom_call.1} parent=1 // pred_fallthru
      _
    // Predicated region
    $region22: #{tpu_custom_call.1} parent=1 // pred_check
      _
    $region23: #{tpu_custom_call.1} parent=1 // pred_check_branch
      %64 = sbr.rel (0) target = $region25
    $region24: #{tpu_custom_call.1} parent=1 // pred_region
      %s66 = ssub.s32 1536, 1536
      %67 = vsyncadd [#allocation6], %s66
      %s68 = sshll.u32 [#allocation5], 4
      %s69 = int_to_ptr.vmem [resolvable:$true] %s68
      %74 = dma.hbm_to_vmem [thread:$0]  %s5, 1536, %s69, [#allocation6], 256, 256, 16
    $region25: #{tpu_custom_call.1} parent=1 // pred_fallthru
      _
    // Predicated region
    $region26: #{tpu_custom_call.1} parent=1 // pred_check
      _
    $region27: #{tpu_custom_call.1} parent=1 // pred_check_branch
      %76 = sbr.rel (0) target = $region29
    $region28: #{tpu_custom_call.1} parent=1 // pred_region
      %77 = dma.done [#allocation3], 1536
    $region29: #{tpu_custom_call.1} parent=1 // pred_fallthru
      _
    // Predicated region
    $region30: #{tpu_custom_call.1} parent=1 // pred_check
      _
    $region31: #{tpu_custom_call.1} parent=1 // pred_check_branch
      %79 = sbr.rel (0) target = $region33
    $region32: #{tpu_custom_call.1} parent=1 // pred_region
      %80 = dma.done [#allocation6], 1536
    $region33: #{tpu_custom_call.1} parent=1 // pred_fallthru
      _
    %v81 = vld [vmem:[%s0] sm:$0x1]
    %vm82 = vcmask 90112
    %83 = vst.msk [vmem:[#allocation7] sm:$0x1] %vm82, %v81
    %v84 = vld [vmem:[%s0] sm:$0x1]
    %v86 = vlaneseq
    %v87 = vshrl.u32 %v86, 7
    %v88 = vsub.s32 0, %v87
    %v89 = vrot.slane %v84, %v88
    %90 = vrot.lane.b32.xlu0 %v89, 116
    %v91 = vpop.permute.xlu0 %90
    %vm93 = vcmask 0
    %94 = vst.msk [vmem:[#allocation8] sm:$0x1] %vm93, %v91
    %v95 = vld [vmem:[%s0] sm:$0x1]
    %v97 = vlaneseq
    %v98 = vshrl.u32 %v97, 7
    %v99 = vsub.s32 0, %v98
    %v100 = vrot.slane %v95, %v99
    %101 = vrot.lane.b32.xlu0 %v100, 115
    %v102 = vpop.permute.xlu0 %101
    %vm104 = vcmask 16384
    %105 = vst.msk [vmem:[#allocation10] sm:$0x1] %vm104, %v102
    %v106 = vld [vmem:[%s1] sm:$0x7]
    %vm107 = vcmask 92160
    %108 = vst.msk [vmem:[#allocation11] sm:$0x7] %vm107, %v106
    %v109 = vld [vmem:[%s1 + $0x3] sm:$0x7]
    %110 = vst.msk [vmem:[#allocation13] sm:$0x7] %vm107, %v109
    %v111 = vld [vmem:[%s1] sm:$0x3f]
    %vm112 = vcmask 29696
    %113 = vst.msk [vmem:[%s11] sm:$0x3f] %vm112, %v111
    %v114 = vld [vmem:[%s1] sm:$0x3f]
    %116 = vrot.lane.b32.xlu0 %v114, 124
    %v117 = vpop.permute.xlu0 %116
    %119 = vst.msk [vmem:[%s12] sm:$0x3f] %vm112, %v117
    %v120 = vld [vmem:[%s1] sm:$0x3f]
    %122 = vrot.lane.b32.xlu0 %v120, 120
    %v123 = vpop.permute.xlu0 %122
    %125 = vst.msk [vmem:[%s13] sm:$0x3f] %vm112, %v123
    %v126 = vld [vmem:[%s2] sm:$0x7]
    %vm127 = vcmask 583680
    %128 = vst.msk [vmem:[#allocation14] sm:$0x7] %vm127, %v126
    %v129 = vld [vmem:[%s2 + $0x3] sm:$0x7]
    %130 = vst.msk [vmem:[#allocation16] sm:$0x7] %vm127, %v129
    %v131 = vld [vmem:[%s2] sm:$0x3f]
    %vm132 = vcmask 70656
    %133 = vst.msk [vmem:[#allocation17] sm:$0x3f] %vm132, %v131
    %v134 = vld [vmem:[%s2] sm:$0x3f]
    %136 = vrot.lane.b32.xlu0 %v134, 119
    %v137 = vpop.permute.xlu0 %136
    %vm139 = vcmask 513024
    %140 = vst.msk [vmem:[#allocation19] sm:$0x3f] %vm139, %v137
    %v141 = vld [vmem:[%s3] sm:$0xff]
    %v142 = vld [vmem:[%s3 + $0x8] sm:$0xff]
    %v143 = vld [vmem:[%s3 + $0x10] sm:$0xff]
    %v144 = vld [vmem:[%s3 + $0x18] sm:$0xff]
    %v145 = vld [vmem:[%s3 + $0x20] sm:$0xff]
    %v146 = vld [vmem:[%s3 + $0x28] sm:$0xff]
    %vm147 = vcmask 23552
    %148 = vst.msk [vmem:[%s18] sm:$0xff] %vm147, %v141
    %149 = vst.msk [vmem:[%s18 + $0x8] sm:$0xff] %vm147, %v142
    %150 = vst.msk [vmem:[%s18 + $0x10] sm:$0xff] %vm147, %v143
    %151 = vst.msk [vmem:[%s18 + $0x18] sm:$0xff] %vm147, %v144
    %152 = vst.msk [vmem:[%s18 + $0x20] sm:$0xff] %vm147, %v145
    %153 = vst.msk [vmem:[%s18 + $0x28] sm:$0xff] %vm147, %v146
    %v154 = vld [vmem:[%s3] sm:$0xff]
    %v155 = vld [vmem:[%s3 + $0x8] sm:$0xff]
    %v156 = vld [vmem:[%s3 + $0x10] sm:$0xff]
    %v157 = vld [vmem:[%s3 + $0x18] sm:$0xff]
    %v158 = vld [vmem:[%s3 + $0x20] sm:$0xff]
    %v159 = vld [vmem:[%s3 + $0x28] sm:$0xff]
    %166 = vrot.lane.b32.xlu0 %v154, 125
    %v167 = vpop.permute.xlu0 %166
    %168 = vrot.lane.b32.xlu0 %v155, 125
    %v169 = vpop.permute.xlu0 %168
    %170 = vrot.lane.b32.xlu0 %v156, 125
    %v171 = vpop.permute.xlu0 %170
    %172 = vrot.lane.b32.xlu0 %v157, 125
    %v173 = vpop.permute.xlu0 %172
    %174 = vrot.lane.b32.xlu0 %v158, 125
    %v175 = vpop.permute.xlu0 %174
    %176 = vrot.lane.b32.xlu0 %v159, 125
    %v177 = vpop.permute.xlu0 %176
    %184 = vst.msk [vmem:[%s19] sm:$0xff] %vm147, %v167
    %185 = vst.msk [vmem:[%s19 + $0x8] sm:$0xff] %vm147, %v169
    %186 = vst.msk [vmem:[%s19 + $0x10] sm:$0xff] %vm147, %v171
    %187 = vst.msk [vmem:[%s19 + $0x18] sm:$0xff] %vm147, %v173
    %188 = vst.msk [vmem:[%s19 + $0x20] sm:$0xff] %vm147, %v175
    %189 = vst.msk [vmem:[%s19 + $0x28] sm:$0xff] %vm147, %v177
    %v190 = vld [vmem:[%s3] sm:$0xff]
    %v191 = vld [vmem:[%s3 + $0x8] sm:$0xff]
    %v192 = vld [vmem:[%s3 + $0x10] sm:$0xff]
    %v193 = vld [vmem:[%s3 + $0x18] sm:$0xff]
    %v194 = vld [vmem:[%s3 + $0x20] sm:$0xff]
    %v195 = vld [vmem:[%s3 + $0x28] sm:$0xff]
    %202 = vrot.lane.b32.xlu0 %v190, 122
    %v203 = vpop.permute.xlu0 %202
    %204 = vrot.lane.b32.xlu0 %v191, 122
    %v205 = vpop.permute.xlu0 %204
    %206 = vrot.lane.b32.xlu0 %v192, 122
    %v207 = vpop.permute.xlu0 %206
    %208 = vrot.lane.b32.xlu0 %v193, 122
    %v209 = vpop.permute.xlu0 %208
    %210 = vrot.lane.b32.xlu0 %v194, 122
    %v211 = vpop.permute.xlu0 %210
    %212 = vrot.lane.b32.xlu0 %v195, 122
    %v213 = vpop.permute.xlu0 %212
    %220 = vst.msk [vmem:[%s20] sm:$0xff] %vm147, %v203
    %221 = vst.msk [vmem:[%s20 + $0x8] sm:$0xff] %vm147, %v205
    %222 = vst.msk [vmem:[%s20 + $0x10] sm:$0xff] %vm147, %v207
    %223 = vst.msk [vmem:[%s20 + $0x18] sm:$0xff] %vm147, %v209
    %224 = vst.msk [vmem:[%s20 + $0x20] sm:$0xff] %vm147, %v211
    %225 = vst.msk [vmem:[%s20 + $0x28] sm:$0xff] %vm147, %v213
    %v226 = vld [vmem:[#allocation2] sm:$0x3]
    %v227 = vld [vmem:[#allocation2 + $0x8] sm:$0x3]
    %v228 = vld [vmem:[#allocation2 + $0x10] sm:$0x3]
    %v229 = vld [vmem:[#allocation2 + $0x18] sm:$0x3]
    %v230 = vld [vmem:[#allocation2 + $0x20] sm:$0x3]
    %v231 = vld [vmem:[#allocation2 + $0x28] sm:$0x3]
    %v232 = vld [vmem:[#allocation2 + $0x30] sm:$0x3]
    %v233 = vld [vmem:[#allocation2 + $0x38] sm:$0x3]
    %v234 = vld [vmem:[#allocation2 + $0x40] sm:$0x3]
    %v235 = vld [vmem:[#allocation2 + $0x48] sm:$0x3]
    %v236 = vld [vmem:[#allocation2 + $0x50] sm:$0x3]
    %v237 = vld [vmem:[#allocation2 + $0x58] sm:$0x3]
    %v250 = vcombine.low %v226, %v227
    %v251 = vcombine.low %v228, %v229
    %v253 = vunpack.c.l.s4 1983009808
    %v254 = vunpack.c.0.s8 %v253
    %v255 = vlaneseq
    %v256 = vshrl.u32 %v255, 7
    %v257 = vsub.s32 %v254, %v256
    %v258 = vrot.slane %v250, %v257
    %v260 = vunpack.c.l.s4 1983009808
    %v261 = vunpack.c.0.s8 %v260
    %v262 = vlaneseq
    %v263 = vshrl.u32 %v262, 7
    %v264 = vsub.s32 %v261, %v263
    %v265 = vrot.slane %v251, %v264
    %v266 = vcombine.low %v258, %v265
    %v267 = vcombine.low %v230, %v231
    %v268 = vcombine.low %v232, %v233
    %v270 = vunpack.c.l.s4 1983009808
    %v271 = vunpack.c.0.s8 %v270
    %v272 = vlaneseq
    %v273 = vshrl.u32 %v272, 7
    %v274 = vsub.s32 %v271, %v273
    %v275 = vrot.slane %v267, %v274
    %v277 = vunpack.c.l.s4 1983009808
    %v278 = vunpack.c.0.s8 %v277
    %v279 = vlaneseq
    %v280 = vshrl.u32 %v279, 7
    %v281 = vsub.s32 %v278, %v280
    %v282 = vrot.slane %v268, %v281
    %v283 = vcombine.low %v275, %v282
    %v284 = vcombine.low %v234, %v235
    %v285 = vcombine.low %v236, %v237
    %v287 = vunpack.c.l.s4 1983009808
    %v288 = vunpack.c.0.s8 %v287
    %v289 = vlaneseq
    %v290 = vshrl.u32 %v289, 7
    %v291 = vsub.s32 %v288, %v290
    %v292 = vrot.slane %v284, %v291
    %v294 = vunpack.c.l.s4 1983009808
    %v295 = vunpack.c.0.s8 %v294
    %v296 = vlaneseq
    %v297 = vshrl.u32 %v296, 7
    %v298 = vsub.s32 %v295, %v297
    %v299 = vrot.slane %v285, %v298
    %v300 = vcombine.low %v292, %v299
    %304 = vst [vmem:[#allocation20] sm:$0xff] %v266
    %305 = vst [vmem:[#allocation20 + $0x8] sm:$0xff] %v283
    %306 = vst [vmem:[#allocation20 + $0x10] sm:$0xff] %v300
    %v307 = vld [vmem:[#allocation2] sm:$0xc]
    %v308 = vld [vmem:[#allocation2 + $0x8] sm:$0xc]
    %v309 = vld [vmem:[#allocation2 + $0x10] sm:$0xc]
    %v310 = vld [vmem:[#allocation2 + $0x18] sm:$0xc]
    %v311 = vld [vmem:[#allocation2 + $0x20] sm:$0xc]
    %v312 = vld [vmem:[#allocation2 + $0x28] sm:$0xc]
    %v313 = vld [vmem:[#allocation2 + $0x30] sm:$0xc]
    %v314 = vld [vmem:[#allocation2 + $0x38] sm:$0xc]
    %v315 = vld [vmem:[#allocation2 + $0x40] sm:$0xc]
    %v316 = vld [vmem:[#allocation2 + $0x48] sm:$0xc]
    %v317 = vld [vmem:[#allocation2 + $0x50] sm:$0xc]
    %v318 = vld [vmem:[#allocation2 + $0x58] sm:$0xc]
    %v331 = vcombine.low %v307, %v308
    %v332 = vcombine.low %v309, %v310
    %v334 = vunpack.c.l.s4 1983009808
    %v335 = vunpack.c.0.s8 %v334
    %v336 = vlaneseq
    %v337 = vshrl.u32 %v336, 7
    %v338 = vsub.s32 %v335, %v337
    %v339 = vrot.slane %v331, %v338
    %v341 = vunpack.c.l.s4 1983009808
    %v342 = vunpack.c.0.s8 %v341
    %v343 = vlaneseq
    %v344 = vshrl.u32 %v343, 7
    %v345 = vsub.s32 %v342, %v344
    %v346 = vrot.slane %v332, %v345
    %v347 = vcombine.high %v339, %v346
    %v348 = vcombine.low %v311, %v312
    %v349 = vcombine.low %v313, %v314
    %v351 = vunpack.c.l.s4 1983009808
    %v352 = vunpack.c.0.s8 %v351
    %v353 = vlaneseq
    %v354 = vshrl.u32 %v353, 7
    %v355 = vsub.s32 %v352, %v354
    %v356 = vrot.slane %v348, %v355
    %v358 = vunpack.c.l.s4 1983009808
    %v359 = vunpack.c.0.s8 %v358
    %v360 = vlaneseq
    %v361 = vshrl.u32 %v360, 7
    %v362 = vsub.s32 %v359, %v361
    %v363 = vrot.slane %v349, %v362
    %v364 = vcombine.high %v356, %v363
    %v365 = vcombine.low %v315, %v316
    %v366 = vcombine.low %v317, %v318
    %v368 = vunpack.c.l.s4 1983009808
    %v369 = vunpack.c.0.s8 %v368
    %v370 = vlaneseq
    %v371 = vshrl.u32 %v370, 7
    %v372 = vsub.s32 %v369, %v371
    %v373 = vrot.slane %v365, %v372
    %v375 = vunpack.c.l.s4 1983009808
    %v376 = vunpack.c.0.s8 %v375
    %v377 = vlaneseq
    %v378 = vshrl.u32 %v377, 7
    %v379 = vsub.s32 %v376, %v378
    %v380 = vrot.slane %v366, %v379
    %v381 = vcombine.high %v373, %v380
    %385 = vst [vmem:[#allocation22] sm:$0xff] %v347
    %386 = vst [vmem:[#allocation22 + $0x8] sm:$0xff] %v364
    %387 = vst [vmem:[#allocation22 + $0x10] sm:$0xff] %v381
    %v388 = vld [vmem:[#allocation2] sm:$0x30]
    %v389 = vld [vmem:[#allocation2 + $0x8] sm:$0x30]
    %v390 = vld [vmem:[#allocation2 + $0x10] sm:$0x30]
    %v391 = vld [vmem:[#allocation2 + $0x18] sm:$0x30]
    %v392 = vld [vmem:[#allocation2 + $0x20] sm:$0x30]
    %v393 = vld [vmem:[#allocation2 + $0x28] sm:$0x30]
    %v394 = vld [vmem:[#allocation2 + $0x30] sm:$0x30]
    %v395 = vld [vmem:[#allocation2 + $0x38] sm:$0x30]
    %v396 = vld [vmem:[#allocation2 + $0x40] sm:$0x30]
    %v397 = vld [vmem:[#allocation2 + $0x48] sm:$0x30]
    %v398 = vld [vmem:[#allocation2 + $0x50] sm:$0x30]
    %v399 = vld [vmem:[#allocation2 + $0x58] sm:$0x30]
    %v412 = vcombine.high %v388, %v389
    %v413 = vcombine.high %v390, %v391
    %v415 = vunpack.c.l.s4 1983009808
    %v416 = vunpack.c.0.s8 %v415
    %v417 = vlaneseq
    %v418 = vshrl.u32 %v417, 7
    %v419 = vsub.s32 %v416, %v418
    %v420 = vrot.slane %v412, %v419
    %v422 = vunpack.c.l.s4 1983009808
    %v423 = vunpack.c.0.s8 %v422
    %v424 = vlaneseq
    %v425 = vshrl.u32 %v424, 7
    %v426 = vsub.s32 %v423, %v425
    %v427 = vrot.slane %v413, %v426
    %v428 = vcombine.low %v420, %v427
    %v429 = vcombine.high %v392, %v393
    %v430 = vcombine.high %v394, %v395
    %v432 = vunpack.c.l.s4 1983009808
    %v433 = vunpack.c.0.s8 %v432
    %v434 = vlaneseq
    %v435 = vshrl.u32 %v434, 7
    %v436 = vsub.s32 %v433, %v435
    %v437 = vrot.slane %v429, %v436
    %v439 = vunpack.c.l.s4 1983009808
    %v440 = vunpack.c.0.s8 %v439
    %v441 = vlaneseq
    %v442 = vshrl.u32 %v441, 7
    %v443 = vsub.s32 %v440, %v442
    %v444 = vrot.slane %v430, %v443
    %v445 = vcombine.low %v437, %v444
    %v446 = vcombine.high %v396, %v397
    %v447 = vcombine.high %v398, %v399
    %v449 = vunpack.c.l.s4 1983009808
    %v450 = vunpack.c.0.s8 %v449
    %v451 = vlaneseq
    %v452 = vshrl.u32 %v451, 7
    %v453 = vsub.s32 %v450, %v452
    %v454 = vrot.slane %v446, %v453
    %v456 = vunpack.c.l.s4 1983009808
    %v457 = vunpack.c.0.s8 %v456
    %v458 = vlaneseq
    %v459 = vshrl.u32 %v458, 7
    %v460 = vsub.s32 %v457, %v459
    %v461 = vrot.slane %v447, %v460
    %v462 = vcombine.low %v454, %v461
    %466 = vst [vmem:[#allocation23] sm:$0xff] %v428
    %467 = vst [vmem:[#allocation23 + $0x8] sm:$0xff] %v445
    %468 = vst [vmem:[#allocation23 + $0x10] sm:$0xff] %v462
    %v469 = vld [vmem:[#allocation2] sm:$0x3f]
    %v470 = vld [vmem:[#allocation2 + $0x8] sm:$0x3f]
    %v471 = vld [vmem:[#allocation2 + $0x10] sm:$0x3f]
    %v472 = vld [vmem:[#allocation2 + $0x18] sm:$0x3f]
    %v473 = vld [vmem:[#allocation2 + $0x20] sm:$0x3f]
    %v474 = vld [vmem:[#allocation2 + $0x28] sm:$0x3f]
    %475 = vst [vmem:[#allocation25] sm:$0x3f] %v469
    %476 = vst [vmem:[#allocation25 + $0x8] sm:$0x3f] %v470
    %477 = vst [vmem:[#allocation25 + $0x10] sm:$0x3f] %v471
    %478 = vst [vmem:[#allocation25 + $0x18] sm:$0x3f] %v472
    %479 = vst [vmem:[#allocation25 + $0x20] sm:$0x3f] %v473
    %480 = vst [vmem:[#allocation25 + $0x28] sm:$0x3f] %v474
    %v481 = vld [vmem:[#allocation2 + $0x30] sm:$0x3f]
    %v482 = vld [vmem:[#allocation2 + $0x38] sm:$0x3f]
    %v483 = vld [vmem:[#allocation2 + $0x40] sm:$0x3f]
    %v484 = vld [vmem:[#allocation2 + $0x48] sm:$0x3f]
    %v485 = vld [vmem:[#allocation2 + $0x50] sm:$0x3f]
    %v486 = vld [vmem:[#allocation2 + $0x58] sm:$0x3f]
    %487 = vst [vmem:[#allocation26] sm:$0x3f] %v481
    %488 = vst [vmem:[#allocation26 + $0x8] sm:$0x3f] %v482
    %489 = vst [vmem:[#allocation26 + $0x10] sm:$0x3f] %v483
    %490 = vst [vmem:[#allocation26 + $0x18] sm:$0x3f] %v484
    %491 = vst [vmem:[#allocation26 + $0x20] sm:$0x3f] %v485
    %492 = vst [vmem:[#allocation26 + $0x28] sm:$0x3f] %v486
    %v493 = vld [vmem:[#allocation5] sm:$0xff]
    %v494 = vld [vmem:[#allocation5 + $0x10] sm:$0xff]
    %v495 = vld [vmem:[#allocation5 + $0x20] sm:$0xff]
    %v496 = vld [vmem:[#allocation5 + $0x30] sm:$0xff]
    %v497 = vld [vmem:[#allocation5 + $0x40] sm:$0xff]
    %v498 = vld [vmem:[#allocation5 + $0x50] sm:$0xff]
    %vm499 = vcmask 195584
    %500 = vst.msk [vmem:[%s26] sm:$0xff] %vm499, %v493
    %501 = vst.msk [vmem:[%s26 + $0x8] sm:$0xff] %vm499, %v494
    %502 = vst.msk [vmem:[%s26 + $0x10] sm:$0xff] %vm499, %v495
    %503 = vst.msk [vmem:[%s26 + $0x18] sm:$0xff] %vm499, %v496
    %504 = vst.msk [vmem:[%s26 + $0x20] sm:$0xff] %vm499, %v497
    %505 = vst.msk [vmem:[%s26 + $0x28] sm:$0xff] %vm499, %v498
    %v506 = vld [vmem:[#allocation5] sm:$0xff]
    %v507 = vld [vmem:[#allocation5 + $0x10] sm:$0xff]
    %v508 = vld [vmem:[#allocation5 + $0x20] sm:$0xff]
    %v509 = vld [vmem:[#allocation5 + $0x30] sm:$0xff]
    %v510 = vld [vmem:[#allocation5 + $0x40] sm:$0xff]
    %v511 = vld [vmem:[#allocation5 + $0x50] sm:$0xff]
    %518 = vrot.lane.b32.xlu0 %v506, 104
    %v519 = vpop.permute.xlu0 %518
    %520 = vrot.lane.b32.xlu0 %v507, 104
    %v521 = vpop.permute.xlu0 %520
    %522 = vrot.lane.b32.xlu0 %v508, 104
    %v523 = vpop.permute.xlu0 %522
    %524 = vrot.lane.b32.xlu0 %v509, 104
    %v525 = vpop.permute.xlu0 %524
    %526 = vrot.lane.b32.xlu0 %v510, 104
    %v527 = vpop.permute.xlu0 %526
    %528 = vrot.lane.b32.xlu0 %v511, 104
    %v529 = vpop.permute.xlu0 %528
    %vm536 = vcmask 785408
    %537 = vst.msk [vmem:[#allocation28] sm:$0xff] %vm536, %v519
    %538 = vst.msk [vmem:[#allocation28 + $0x8] sm:$0xff] %vm536, %v521
    %539 = vst.msk [vmem:[#allocation28 + $0x10] sm:$0xff] %vm536, %v523
    %540 = vst.msk [vmem:[#allocation28 + $0x18] sm:$0xff] %vm536, %v525
    %541 = vst.msk [vmem:[#allocation28 + $0x20] sm:$0xff] %vm536, %v527
    %542 = vst.msk [vmem:[#allocation28 + $0x28] sm:$0xff] %vm536, %v529
    %v543 = vld [vmem:[#allocation5] sm:$0xff]
    %v544 = vld [vmem:[#allocation5 + $0x8] sm:$0xff]
    %v545 = vld [vmem:[#allocation5 + $0x10] sm:$0xff]
    %v546 = vld [vmem:[#allocation5 + $0x18] sm:$0xff]
    %v547 = vld [vmem:[#allocation5 + $0x20] sm:$0xff]
    %v548 = vld [vmem:[#allocation5 + $0x28] sm:$0xff]
    %v549 = vld [vmem:[#allocation5 + $0x30] sm:$0xff]
    %v550 = vld [vmem:[#allocation5 + $0x38] sm:$0xff]
    %v551 = vld [vmem:[#allocation5 + $0x40] sm:$0xff]
    %v552 = vld [vmem:[#allocation5 + $0x48] sm:$0xff]
    %v553 = vld [vmem:[#allocation5 + $0x50] sm:$0xff]
    %v554 = vld [vmem:[#allocation5 + $0x58] sm:$0xff]
    %567 = vrot.lane.b32.xlu0 %v543, 8
    %v568 = vpop.permute.xlu0 %567
    %569 = vrot.lane.b32.xlu0 %v544, 8
    %v570 = vpop.permute.xlu0 %569
    %571 = vrot.lane.b32.xlu0 %v545, 8
    %v572 = vpop.permute.xlu0 %571
    %573 = vrot.lane.b32.xlu0 %v546, 8
    %v574 = vpop.permute.xlu0 %573
    %575 = vrot.lane.b32.xlu0 %v547, 8
    %v576 = vpop.permute.xlu0 %575
    %577 = vrot.lane.b32.xlu0 %v548, 8
    %v578 = vpop.permute.xlu0 %577
    %579 = vrot.lane.b32.xlu0 %v549, 8
    %v580 = vpop.permute.xlu0 %579
    %581 = vrot.lane.b32.xlu0 %v550, 8
    %v582 = vpop.permute.xlu0 %581
    %583 = vrot.lane.b32.xlu0 %v551, 8
    %v584 = vpop.permute.xlu0 %583
    %585 = vrot.lane.b32.xlu0 %v552, 8
    %v586 = vpop.permute.xlu0 %585
    %587 = vrot.lane.b32.xlu0 %v553, 8
    %v588 = vpop.permute.xlu0 %587
    %589 = vrot.lane.b32.xlu0 %v554, 8
    %v590 = vpop.permute.xlu0 %589
    %vm591 = vcmask 64512
    %v592 = vsel %vm591, %v568, %v570
    %v593 = vsel %vm591, %v572, %v574
    %v594 = vsel %vm591, %v576, %v578
    %v595 = vsel %vm591, %v580, %v582
    %v596 = vsel %vm591, %v584, %v586
    %v597 = vsel %vm591, %v588, %v590
    %vm604 = vcmask 588800
    %605 = vst.msk [vmem:[#allocation29] sm:$0xff] %vm604, %v592
    %606 = vst.msk [vmem:[#allocation29 + $0x8] sm:$0xff] %vm604, %v593
    %607 = vst.msk [vmem:[#allocation29 + $0x10] sm:$0xff] %vm604, %v594
    %608 = vst.msk [vmem:[#allocation29 + $0x18] sm:$0xff] %vm604, %v595
    %609 = vst.msk [vmem:[#allocation29 + $0x20] sm:$0xff] %vm604, %v596
    %610 = vst.msk [vmem:[#allocation29 + $0x28] sm:$0xff] %vm604, %v597
    // Predicated region
    $region34: #{tpu_custom_call.1} parent=1 // pred_check
      _
    $region35: #{tpu_custom_call.1} parent=1 // pred_check_branch
      %612 = sbr.rel (0) target = $region37
    $region36: #{tpu_custom_call.1} parent=1 // pred_region
      %s614 = ssub.s32 16, 16
      %615 = vsyncadd [#allocation4], %s614
      %s617 = sshll.u32 [#allocation7], 4
      %s618 = int_to_ptr.vmem [resolvable:$true] %s617
      %620 = dma.vmem_to_hbm [thread:$0]  %s618, 16, %s6, [#allocation4]
    $region37: #{tpu_custom_call.1} parent=1 // pred_fallthru
      _
    // Predicated region
    $region38: #{tpu_custom_call.1} parent=1 // pred_check
      _
    $region39: #{tpu_custom_call.1} parent=1 // pred_check_branch
      %622 = sbr.rel (0) target = $region41
    $region40: #{tpu_custom_call.1} parent=1 // pred_region
      %s624 = ssub.s32 16, 16
      %625 = vsyncadd [#allocation9], %s624
      %s627 = sshll.u32 [#allocation8], 4
      %s628 = int_to_ptr.vmem [resolvable:$true] %s627
      %630 = dma.vmem_to_hbm [thread:$0]  %s628, 16, %s7, [#allocation9]
    $region41: #{tpu_custom_call.1} parent=1 // pred_fallthru
      _
    // Predicated region
    $region42: #{tpu_custom_call.1} parent=1 // pred_check
      _
    $region43: #{tpu_custom_call.1} parent=1 // pred_check_branch
      %632 = sbr.rel (0) target = $region45
    $region44: #{tpu_custom_call.1} parent=1 // pred_region
      %s634 = ssub.s32 16, 16
      %635 = vsyncadd [#allocation9], %s634
      %s637 = sshll.u32 [#allocation10], 4
      %s638 = int_to_ptr.vmem [resolvable:$true] %s637
      %640 = dma.vmem_to_hbm [thread:$0]  %s638, 16, %s8, [#allocation9]
    $region45: #{tpu_custom_call.1} parent=1 // pred_fallthru
      _
    // Predicated region
    $region46: #{tpu_custom_call.1} parent=1 // pred_check
      _
    $region47: #{tpu_custom_call.1} parent=1 // pred_check_branch
      %642 = sbr.rel (0) target = $region49
    $region48: #{tpu_custom_call.1} parent=1 // pred_region
      %s644 = ssub.s32 64, 64
      %645 = vsyncadd [#allocation12], %s644
      %s647 = sshll.u32 [#allocation11], 4
      %s648 = int_to_ptr.vmem [resolvable:$true] %s647
      %650 = dma.vmem_to_hbm [thread:$0]  %s648, 64, %s9, [#allocation12]
    $region49: #{tpu_custom_call.1} parent=1 // pred_fallthru
      _
    // Predicated region
    $region50: #{tpu_custom_call.1} parent=1 // pred_check
      _
    $region51: #{tpu_custom_call.1} parent=1 // pred_check_branch
      %652 = sbr.rel (0) target = $region53
    $region52: #{tpu_custom_call.1} parent=1 // pred_region
      %s654 = ssub.s32 64, 64
      %655 = vsyncadd [#allocation12], %s654
      %s657 = sshll.u32 [#allocation13], 4
      %s658 = int_to_ptr.vmem [resolvable:$true] %s657
      %660 = dma.vmem_to_hbm [thread:$0]  %s658, 64, %s10, [#allocation12]
    $region53: #{tpu_custom_call.1} parent=1 // pred_fallthru
      _
    // Predicated region
    $region54: #{tpu_custom_call.1} parent=1 // pred_check
      _
    $region55: #{tpu_custom_call.1} parent=1 // pred_check_branch
      %662 = sbr.rel (0) target = $region57
    $region56: #{tpu_custom_call.1} parent=1 // pred_region
      _
    $region57: #{tpu_custom_call.1} parent=1 // pred_fallthru
      _
    // Predicated region
    $region58: #{tpu_custom_call.1} parent=1 // pred_check
      _
    $region59: #{tpu_custom_call.1} parent=1 // pred_check_branch
      %664 = sbr.rel (0) target = $region61
    $region60: #{tpu_custom_call.1} parent=1 // pred_region
      _
    $region61: #{tpu_custom_call.1} parent=1 // pred_fallthru
      _
    // Predicated region
    $region62: #{tpu_custom_call.1} parent=1 // pred_check
      _
    $region63: #{tpu_custom_call.1} parent=1 // pred_check_branch
      %666 = sbr.rel (0) target = $region65
    $region64: #{tpu_custom_call.1} parent=1 // pred_region
      _
    $region65: #{tpu_custom_call.1} parent=1 // pred_fallthru
      _
    // Predicated region
    $region66: #{tpu_custom_call.1} parent=1 // pred_check
      _
    $region67: #{tpu_custom_call.1} parent=1 // pred_check_branch
      %668 = sbr.rel (0) target = $region69
    $region68: #{tpu_custom_call.1} parent=1 // pred_region
      %s670 = ssub.s32 64, 64
      %671 = vsyncadd [#allocation15], %s670
      %s673 = sshll.u32 [#allocation14], 4
      %s674 = int_to_ptr.vmem [resolvable:$true] %s673
      %676 = dma.vmem_to_hbm [thread:$0]  %s674, 64, %s14, [#allocation15]
    $region69: #{tpu_custom_call.1} parent=1 // pred_fallthru
      _
    // Predicated region
    $region70: #{tpu_custom_call.1} parent=1 // pred_check
      _
    $region71: #{tpu_custom_call.1} parent=1 // pred_check_branch
      %678 = sbr.rel (0) target = $region73
    $region72: #{tpu_custom_call.1} parent=1 // pred_region
      %s680 = ssub.s32 64, 64
      %681 = vsyncadd [#allocation15], %s680
      %s683 = sshll.u32 [#allocation16], 4
      %s684 = int_to_ptr.vmem [resolvable:$true] %s683
      %686 = dma.vmem_to_hbm [thread:$0]  %s684, 64, %s15, [#allocation15]
    $region73: #{tpu_custom_call.1} parent=1 // pred_fallthru
      _
    // Predicated region
    $region74: #{tpu_custom_call.1} parent=1 // pred_check
      _
    $region75: #{tpu_custom_call.1} parent=1 // pred_check_branch
      %688 = sbr.rel (0) target = $region77
    $region76: #{tpu_custom_call.1} parent=1 // pred_region
      %s690 = ssub.s32 128, 128
      %691 = vsyncadd [#allocation18], %s690
      %s693 = sshll.u32 [#allocation17], 4
      %s694 = int_to_ptr.vmem [resolvable:$true] %s693
      %696 = dma.vmem_to_hbm [thread:$0]  %s694, 128, %s16, [#allocation18]
    $region77: #{tpu_custom_call.1} parent=1 // pred_fallthru
      _
    // Predicated region
    $region78: #{tpu_custom_call.1} parent=1 // pred_check
      _
    $region79: #{tpu_custom_call.1} parent=1 // pred_check_branch
      %698 = sbr.rel (0) target = $region81
    $region80: #{tpu_custom_call.1} parent=1 // pred_region
      %s700 = ssub.s32 128, 128
      %701 = vsyncadd [#allocation18], %s700
      %s703 = sshll.u32 [#allocation19], 4
      %s704 = int_to_ptr.vmem [resolvable:$true] %s703
      %706 = dma.vmem_to_hbm [thread:$0]  %s704, 128, %s17, [#allocation18]
    $region81: #{tpu_custom_call.1} parent=1 // pred_fallthru
      _
    // Predicated region
    $region82: #{tpu_custom_call.1} parent=1 // pred_check
      _
    $region83: #{tpu_custom_call.1} parent=1 // pred_check_branch
      %708 = sbr.rel (0) target = $region85
    $region84: #{tpu_custom_call.1} parent=1 // pred_region
      _
    $region85: #{tpu_custom_call.1} parent=1 // pred_fallthru
      _
    // Predicated region
    $region86: #{tpu_custom_call.1} parent=1 // pred_check
      _
    $region87: #{tpu_custom_call.1} parent=1 // pred_check_branch
      %710 = sbr.rel (0) target = $region89
    $region88: #{tpu_custom_call.1} parent=1 // pred_region
      _
    $region89: #{tpu_custom_call.1} parent=1 // pred_fallthru
      _
    // Predicated region
    $region90: #{tpu_custom_call.1} parent=1 // pred_check
      _
    $region91: #{tpu_custom_call.1} parent=1 // pred_check_branch
      %712 = sbr.rel (0) target = $region93
    $region92: #{tpu_custom_call.1} parent=1 // pred_region
      _
    $region93: #{tpu_custom_call.1} parent=1 // pred_fallthru
      _
    // Predicated region
    $region94: #{tpu_custom_call.1} parent=1 // pred_check
      _
    $region95: #{tpu_custom_call.1} parent=1 // pred_check_branch
      %714 = sbr.rel (0) target = $region97
    $region96: #{tpu_custom_call.1} parent=1 // pred_region
      %s716 = ssub.s32 384, 384
      %717 = vsyncadd [#allocation21], %s716
      %s719 = sshll.u32 [#allocation20], 4
      %s720 = int_to_ptr.vmem [resolvable:$true] %s719
      %722 = dma.vmem_to_hbm [thread:$0]  %s720, 384, %s21, [#allocation21]
    $region97: #{tpu_custom_call.1} parent=1 // pred_fallthru
      _
    // Predicated region
    $region98: #{tpu_custom_call.1} parent=1 // pred_check
      _
    $region99: #{tpu_custom_call.1} parent=1 // pred_check_branch
      %724 = sbr.rel (0) target = $region101
    $region100: #{tpu_custom_call.1} parent=1 // pred_region
      %s726 = ssub.s32 384, 384
      %727 = vsyncadd [#allocation21], %s726
      %s729 = sshll.u32 [#allocation22], 4
      %s730 = int_to_ptr.vmem [resolvable:$true] %s729
      %732 = dma.vmem_to_hbm [thread:$0]  %s730, 384, %s22, [#allocation21]
    $region101: #{tpu_custom_call.1} parent=1 // pred_fallthru
      _
    // Predicated region
    $region102: #{tpu_custom_call.1} parent=1 // pred_check
      _
    $region103: #{tpu_custom_call.1} parent=1 // pred_check_branch
      %734 = sbr.rel (0) target = $region105
    $region104: #{tpu_custom_call.1} parent=1 // pred_region
      %s736 = ssub.s32 384, 384
      %737 = vsyncadd [#allocation24], %s736
      %s739 = sshll.u32 [#allocation23], 4
      %s740 = int_to_ptr.vmem [resolvable:$true] %s739
      %742 = dma.vmem_to_hbm [thread:$0]  %s740, 384, %s23, [#allocation24]
    $region105: #{tpu_custom_call.1} parent=1 // pred_fallthru
      _
    // Predicated region
    $region106: #{tpu_custom_call.1} parent=1 // pred_check
      _
    $region107: #{tpu_custom_call.1} parent=1 // pred_check_branch
      %744 = sbr.rel (0) target = $region109
    $region108: #{tpu_custom_call.1} parent=1 // pred_region
      %s746 = ssub.s32 768, 768
      %747 = vsyncadd [#allocation24], %s746
      %s749 = sshll.u32 [#allocation25], 4
      %s750 = int_to_ptr.vmem [resolvable:$true] %s749
      %752 = dma.vmem_to_hbm [thread:$0]  %s750, 768, %s24, [#allocation24]
    $region109: #{tpu_custom_call.1} parent=1 // pred_fallthru
      _
    // Predicated region
    $region110: #{tpu_custom_call.1} parent=1 // pred_check
      _
    $region111: #{tpu_custom_call.1} parent=1 // pred_check_branch
      %754 = sbr.rel (0) target = $region113
    $region112: #{tpu_custom_call.1} parent=1 // pred_region
      %s756 = ssub.s32 768, 768
      %757 = vsyncadd [#allocation27], %s756
      %s759 = sshll.u32 [#allocation26], 4
      %s760 = int_to_ptr.vmem [resolvable:$true] %s759
      %762 = dma.vmem_to_hbm [thread:$0]  %s760, 768, %s25, [#allocation27]
    $region113: #{tpu_custom_call.1} parent=1 // pred_fallthru
      _
    // Predicated region
    $region114: #{tpu_custom_call.1} parent=1 // pred_check
      _
    $region115: #{tpu_custom_call.1} parent=1 // pred_check_branch
      %764 = sbr.rel (0) target = $region117
    $region116: #{tpu_custom_call.1} parent=1 // pred_region
      _
    $region117: #{tpu_custom_call.1} parent=1 // pred_fallthru
      _
    // Predicated region
    $region118: #{tpu_custom_call.1} parent=1 // pred_check
      _
    $region119: #{tpu_custom_call.1} parent=1 // pred_check_branch
      %766 = sbr.rel (0) target = $region121
    $region120: #{tpu_custom_call.1} parent=1 // pred_region
      %s768 = ssub.s32 768, 768
      %769 = vsyncadd [#allocation27], %s768
      %s770 = sshll.u32 [#allocation28], 4
      %s771 = int_to_ptr.vmem [resolvable:$true] %s770
      %776 = dma.vmem_to_hbm [thread:$0]  %s771, 768, %s27, [#allocation27], 128, 128, 8
    $region121: #{tpu_custom_call.1} parent=1 // pred_fallthru
      _
    // Predicated region
    $region122: #{tpu_custom_call.1} parent=1 // pred_check
      _
    $region123: #{tpu_custom_call.1} parent=1 // pred_check_branch
      %778 = sbr.rel (0) target = $region125
    $region124: #{tpu_custom_call.1} parent=1 // pred_region
      %s780 = ssub.s32 768, 768
      %781 = vsyncadd [#allocation30], %s780
      %s782 = sshll.u32 [#allocation29], 4
      %s783 = int_to_ptr.vmem [resolvable:$true] %s782
      %788 = dma.vmem_to_hbm [thread:$0]  %s783, 768, %s28, [#allocation30], 128, 128, 8
    $region125: #{tpu_custom_call.1} parent=1 // pred_fallthru
      _
    // Predicated region
    $region126: #{tpu_custom_call.1} parent=1 // pred_check
      _
    $region127: #{tpu_custom_call.1} parent=1 // pred_check_branch
      %790 = sbr.rel (0) target = $region129
    $region128: #{tpu_custom_call.1} parent=1 // pred_region
      %791 = dma.done [#allocation4], 16
    $region129: #{tpu_custom_call.1} parent=1 // pred_fallthru
      _
    // Predicated region
    $region130: #{tpu_custom_call.1} parent=1 // pred_check
      _
    $region131: #{tpu_custom_call.1} parent=1 // pred_check_branch
      %793 = sbr.rel (0) target = $region133
    $region132: #{tpu_custom_call.1} parent=1 // pred_region
      %794 = dma.done [#allocation9], 16
    $region133: #{tpu_custom_call.1} parent=1 // pred_fallthru
      _
    // Predicated region
    $region134: #{tpu_custom_call.1} parent=1 // pred_check
      _
    $region135: #{tpu_custom_call.1} parent=1 // pred_check_branch
      %796 = sbr.rel (0) target = $region137
    $region136: #{tpu_custom_call.1} parent=1 // pred_region
      %797 = dma.done [#allocation9], 16
    $region137: #{tpu_custom_call.1} parent=1 // pred_fallthru
      _
    // Predicated region
    $region138: #{tpu_custom_call.1} parent=1 // pred_check
      _
    $region139: #{tpu_custom_call.1} parent=1 // pred_check_branch
      %799 = sbr.rel (0) target = $region141
    $region140: #{tpu_custom_call.1} parent=1 // pred_region
      %800 = dma.done [#allocation12], 64
    $region141: #{tpu_custom_call.1} parent=1 // pred_fallthru
      _
    // Predicated region
    $region142: #{tpu_custom_call.1} parent=1 // pred_check
      _
    $region143: #{tpu_custom_call.1} parent=1 // pred_check_branch
      %802 = sbr.rel (0) target = $region145
    $region144: #{tpu_custom_call.1} parent=1 // pred_region
      %803 = dma.done [#allocation12], 64
    $region145: #{tpu_custom_call.1} parent=1 // pred_fallthru
      _
    // Predicated region
    $region146: #{tpu_custom_call.1} parent=1 // pred_check
      _
    $region147: #{tpu_custom_call.1} parent=1 // pred_check_branch
      %805 = sbr.rel (0) target = $region149
    $region148: #{tpu_custom_call.1} parent=1 // pred_region
      _
    $region149: #{tpu_custom_call.1} parent=1 // pred_fallthru
      _
    // Predicated region
    $region150: #{tpu_custom_call.1} parent=1 // pred_check
      _
    $region151: #{tpu_custom_call.1} parent=1 // pred_check_branch
      %807 = sbr.rel (0) target = $region153
    $region152: #{tpu_custom_call.1} parent=1 // pred_region
      _
    $region153: #{tpu_custom_call.1} parent=1 // pred_fallthru
      _
    // Predicated region
    $region154: #{tpu_custom_call.1} parent=1 // pred_check
      _
    $region155: #{tpu_custom_call.1} parent=1 // pred_check_branch
      %809 = sbr.rel (0) target = $region157
    $region156: #{tpu_custom_call.1} parent=1 // pred_region
      _
    $region157: #{tpu_custom_call.1} parent=1 // pred_fallthru
      _
    // Predicated region
    $region158: #{tpu_custom_call.1} parent=1 // pred_check
      _
    $region159: #{tpu_custom_call.1} parent=1 // pred_check_branch
      %811 = sbr.rel (0) target = $region161
    $region160: #{tpu_custom_call.1} parent=1 // pred_region
      %812 = dma.done [#allocation15], 64
    $region161: #{tpu_custom_call.1} parent=1 // pred_fallthru
      _
    // Predicated region
    $region162: #{tpu_custom_call.1} parent=1 // pred_check
      _
    $region163: #{tpu_custom_call.1} parent=1 // pred_check_branch
      %814 = sbr.rel (0) target = $region165
    $region164: #{tpu_custom_call.1} parent=1 // pred_region
      %815 = dma.done [#allocation15], 64
    $region165: #{tpu_custom_call.1} parent=1 // pred_fallthru
      _
    // Predicated region
    $region166: #{tpu_custom_call.1} parent=1 // pred_check
      _
    $region167: #{tpu_custom_call.1} parent=1 // pred_check_branch
      %817 = sbr.rel (0) target = $region169
    $region168: #{tpu_custom_call.1} parent=1 // pred_region
      %818 = dma.done [#allocation18], 128
    $region169: #{tpu_custom_call.1} parent=1 // pred_fallthru
      _
    // Predicated region
    $region170: #{tpu_custom_call.1} parent=1 // pred_check
      _
    $region171: #{tpu_custom_call.1} parent=1 // pred_check_branch
      %820 = sbr.rel (0) target = $region173
    $region172: #{tpu_custom_call.1} parent=1 // pred_region
      %821 = dma.done [#allocation18], 128
    $region173: #{tpu_custom_call.1} parent=1 // pred_fallthru
      _
    // Predicated region
    $region174: #{tpu_custom_call.1} parent=1 // pred_check
      _
    $region175: #{tpu_custom_call.1} parent=1 // pred_check_branch
      %823 = sbr.rel (0) target = $region177
    $region176: #{tpu_custom_call.1} parent=1 // pred_region
      _
    $region177: #{tpu_custom_call.1} parent=1 // pred_fallthru
      _
    // Predicated region
    $region178: #{tpu_custom_call.1} parent=1 // pred_check
      _
    $region179: #{tpu_custom_call.1} parent=1 // pred_check_branch
      %825 = sbr.rel (0) target = $region181
    $region180: #{tpu_custom_call.1} parent=1 // pred_region
      _
    $region181: #{tpu_custom_call.1} parent=1 // pred_fallthru
      _
    // Predicated region
    $region182: #{tpu_custom_call.1} parent=1 // pred_check
      _
    $region183: #{tpu_custom_call.1} parent=1 // pred_check_branch
      %827 = sbr.rel (0) target = $region185
    $region184: #{tpu_custom_call.1} parent=1 // pred_region
      _
    $region185: #{tpu_custom_call.1} parent=1 // pred_fallthru
      _
    // Predicated region
    $region186: #{tpu_custom_call.1} parent=1 // pred_check
      _
    $region187: #{tpu_custom_call.1} parent=1 // pred_check_branch
      %829 = sbr.rel (0) target = $region189
    $region188: #{tpu_custom_call.1} parent=1 // pred_region
      %830 = dma.done [#allocation21], 384
    $region189: #{tpu_custom_call.1} parent=1 // pred_fallthru
      _
    // Predicated region
    $region190: #{tpu_custom_call.1} parent=1 // pred_check
      _
    $region191: #{tpu_custom_call.1} parent=1 // pred_check_branch
      %832 = sbr.rel (0) target = $region193
    $region192: #{tpu_custom_call.1} parent=1 // pred_region
      %833 = dma.done [#allocation21], 384
    $region193: #{tpu_custom_call.1} parent=1 // pred_fallthru
      _
    // Predicated region
    $region194: #{tpu_custom_call.1} parent=1 // pred_check
      _
    $region195: #{tpu_custom_call.1} parent=1 // pred_check_branch
      %835 = sbr.rel (0) target = $region197
    $region196: #{tpu_custom_call.1} parent=1 // pred_region
      %836 = dma.done [#allocation24], 384
    $region197: #{tpu_custom_call.1} parent=1 // pred_fallthru
      _
    // Predicated region
    $region198: #{tpu_custom_call.1} parent=1 // pred_check
      _
    $region199: #{tpu_custom_call.1} parent=1 // pred_check_branch
      %838 = sbr.rel (0) target = $region201
    $region200: #{tpu_custom_call.1} parent=1 // pred_region
      %839 = dma.done [#allocation24], 768
    $region201: #{tpu_custom_call.1} parent=1 // pred_fallthru
      _
    // Predicated region
    $region202: #{tpu_custom_call.1} parent=1 // pred_check
      _
    $region203: #{tpu_custom_call.1} parent=1 // pred_check_branch
      %841 = sbr.rel (0) target = $region205
    $region204: #{tpu_custom_call.1} parent=1 // pred_region
      %842 = dma.done [#allocation27], 768
    $region205: #{tpu_custom_call.1} parent=1 // pred_fallthru
      _
    // Predicated region
    $region206: #{tpu_custom_call.1} parent=1 // pred_check
      _
    $region207: #{tpu_custom_call.1} parent=1 // pred_check_branch
      %844 = sbr.rel (0) target = $region209
    $region208: #{tpu_custom_call.1} parent=1 // pred_region
      _
    $region209: #{tpu_custom_call.1} parent=1 // pred_fallthru
      _
    // Predicated region
    $region210: #{tpu_custom_call.1} parent=1 // pred_check
      _
    $region211: #{tpu_custom_call.1} parent=1 // pred_check_branch
      %846 = sbr.rel (0) target = $region213
    $region212: #{tpu_custom_call.1} parent=1 // pred_region
      %847 = dma.done [#allocation27], 768
    $region213: #{tpu_custom_call.1} parent=1 // pred_fallthru
      _
    // Predicated region
    $region214: #{tpu_custom_call.1} parent=1 // pred_check
      _
    $region215: #{tpu_custom_call.1} parent=1 // pred_check_branch
      %849 = sbr.rel (0) target = $region217
    $region216: #{tpu_custom_call.1} parent=1 // pred_region
      %850 = dma.done [#allocation30], 768
    $region217: #{tpu_custom_call.1} parent=1 // pred_fallthru
      _
    %851 = vsyncpa [#allocation3], 1
    %852 = vsyncpa [#allocation6], 1
    %853 = vsyncpa [#allocation4], 1
    %854 = vsyncpa [#allocation9], 1
    %855 = vsyncpa [#allocation12], 1
    %856 = vsyncpa [#allocation15], 1
    %857 = vsyncpa [#allocation18], 1
    %858 = vsyncpa [#allocation21], 1
    %859 = vsyncpa [#allocation24], 1
    %860 = vsyncpa [#allocation27], 1
    %861 = vsyncpa [#allocation30], 1

</llo_original>
